<compile_context>
chip_gen: v7x
topology: tpu7x:2x2x1
jax: 0.10.0
libtpu: 0.0.40
codegen_flags: <defaults>
</compile_context>

<pallas_src>
import functools

import jax
import jax.numpy as jnp
from jax.experimental import pallas as pl
from jax.experimental.pallas import tpu as pltpu

EPS = 7e-05

# VMEM budgeting (conservative so the same tiling is safe on v5e/v6e (128 MiB)
# and v7x (64 MiB physical / 32 MiB default scoped limit)).
_VMEM_TILE_BUDGET = 32 * 1024 * 1024   # modeled: pipeline buffers + f32 temporaries
_VMEM_LIMIT_BYTES = 48 * 1024 * 1024   # scoped limit handed to Mosaic
_MAX_TILE_N = 4096                     # rows per grid step (cap for tiny V)


def _reverse_kl_kernel(logits_ref, targets_ref, loss_ref, *, eps, inv_temperature, inv_z):
    # logits_ref/targets_ref: (tile_n, V) block in VMEM; loss_ref: (tile_n, 1).
    # Estimate softmax first, then target softmax, so the peak number of live
    # full-tile f32 temporaries stays ~3-4 (helps the compiler's VMEM reuse).
    lg = logits_ref[...].astype(jnp.float32)
    e = jnp.exp(lg - jnp.max(lg, axis=-1, keepdims=True))
    e = e * pl.reciprocal(jnp.sum(e, axis=-1, keepdims=True), approx=False)
    en = e + eps                                    # (softmax(logits) + eps)

    tg = targets_ref[...].astype(jnp.float32)
    if inv_temperature != 1.0:                      # trace-time branch (Python float)
        tg = tg * inv_temperature
    t = jnp.exp(tg - jnp.max(tg, axis=-1, keepdims=True))
    t = t * pl.reciprocal(jnp.sum(t, axis=-1, keepdims=True), approx=False)
    tn = t + eps                                    # (softmax(targets/T) + eps)

    # powmax(x + eps) fused: sum(softmax) == 1, so the renormalizer is the
    # compile-time constant Z = 1 + eps*V.  est = en/Z, tgt = tn/Z, and the 1/Z
    # cancels inside log(est/tgt):
    #   row = (1/Z) * sum(en * log(en / tn))
    row = jnp.sum(en * jnp.log(en / tn), axis=-1, keepdims=True) * inv_z
    loss_ref[...] = row.astype(loss_ref.dtype)


def _choose_tile_n(n, v, in_itemsize, budget_bytes=_VMEM_TILE_BUDGET):
    """Largest row tile (multiple of 8, <= _MAX_TILE_N) fitting the VMEM budget."""
    # 2 inputs x 2 pipeline buffers at native width
    bytes_in = 2 * 2 * v * in_itemsize
    # ~6 full-tile f32 temporaries live inside the kernel body (conservative)
    bytes_tmp = 6 * v * 4
    # (tile_n, 1) output block lane-pads to 128 in VMEM, double-buffered
    bytes_out = 2 * 128 * 4
    per_row = bytes_in + bytes_tmp + bytes_out
    tile = budget_bytes // max(per_row, 1)
    tile = max(8, min(int(tile), _MAX_TILE_N))
    tile = (tile // 8) * 8
    n_pad8 = ((n + 7) // 8) * 8
    return max(8, min(tile, n_pad8))


def reverse_kl_per_row(logits_2d, targets_2d, *, eps=EPS, temperature=1.0, tile_n=None):
    """Pallas hot path: per-row reverse KL for (N, V) inputs -> (N,) float32."""
    n, v = logits_2d.shape
    itemsize = max(jnp.dtype(logits_2d.dtype).itemsize,
                   jnp.dtype(targets_2d.dtype).itemsize)
    if tile_n is None:
        tile_n = _choose_tile_n(n, v, itemsize)
    # TODO(synk): for very large vocab (>=128K in f32) a V-tiled online-softmax
    # variant would be needed to keep blocks inside VMEM instead of shrinking tile_n.

    # Pad rows so the grid covers N exactly; padded rows are sliced off below.
    n_pad = pl.cdiv(n, tile_n) * tile_n
    if n_pad != n:
        pad = n_pad - n
        logits_2d = jnp.pad(logits_2d, ((0, pad), (0, 0)))
        targets_2d = jnp.pad(targets_2d, ((0, pad), (0, 0)))

    kernel = functools.partial(
        _reverse_kl_kernel,
        eps=float(eps),
        inv_temperature=1.0 / float(temperature),
        inv_z=1.0 / (1.0 + float(eps) * float(v)),
    )

    loss = pl.pallas_call(
        kernel,
        out_shape=jax.ShapeDtypeStruct((n_pad, 1), jnp.float32),
        grid_spec=pltpu.PrefetchScalarGridSpec(
            num_scalar_prefetch=0,
            grid=(n_pad // tile_n,),
            in_specs=[
                pl.BlockSpec((tile_n, v), lambda i: (i, 0)),
                pl.BlockSpec((tile_n, v), lambda i: (i, 0)),
            ],
            out_specs=pl.BlockSpec((tile_n, 1), lambda i: (i, 0)),
        ),
        compiler_params=pltpu.CompilerParams(
            # Row axis is embarrassingly parallel -> shards across the 2 TCs on v7x.
            dimension_semantics=("parallel",),
            vmem_limit_bytes=_VMEM_LIMIT_BYTES,
        ),
    )(logits_2d, targets_2d)
    return loss[:n, 0]


class ReverseKLDivLoss:
    """JAX/Pallas port of the PyTorch ReverseKLDivLoss module."""

    def __init__(self, eps=EPS, return_scalar: bool = True):
        self.eps = eps
        self.return_scalar = return_scalar

    def __call__(self, logits, targets, masks=None, T: float = 1.0):
        bzs = logits.shape[0]
        v = logits.shape[-1]
        logits_2d = logits.reshape(-1, v)
        # NOTE: unlike the torch code we do NOT downcast targets to logits'
        # dtype here; both operands are upcast to f32 inside the kernel
        # (equivalent to the reference's .float() softmax, and keeps the HBM
        # feed at the inputs' native width, e.g. bf16).
        targets_2d = targets.reshape(-1, v)

        loss = reverse_kl_per_row(
            logits_2d, targets_2d, eps=self.eps, temperature=T
        )

        if self.return_scalar:
            if masks is not None:
                m = masks.reshape(-1).astype(jnp.float32)
                # masked_select(...).mean() == sum(loss*m)/sum(m)
                return jnp.sum(loss * m) / jnp.sum(m)
            return jnp.mean(loss)
        else:
            if masks is not None:
                m = masks.reshape(-1).astype(loss.dtype)
                loss = loss * m
            return loss.reshape(bzs, -1)


def _reference(logits, targets, masks=None, T=1.0, eps=EPS, return_scalar=True):
    """Pure-JAX reference mirroring the PyTorch code (no Pallas)."""
    v = logits.shape[-1]
    bzs = logits.shape[0]
    lg = logits.reshape(-1, v).astype(jnp.float32)
    tg = targets.reshape(-1, v).astype(jnp.float32)
    est = jax.nn.softmax(lg, axis=-1)
    tgt = jax.nn.softmax(tg / T, axis=-1)
    est = est + eps
    est = est / jnp.sum(est, axis=-1, keepdims=True)
    tgt = tgt + eps
    tgt = tgt / jnp.sum(tgt, axis=-1, keepdims=True)
    loss = jnp.sum(est * (jnp.log(est) - jnp.log(tgt)), axis=-1)
    if return_scalar:
        if masks is not None:
            m = masks.reshape(-1).astype(jnp.float32)
            return jnp.sum(loss * m) / jnp.sum(m)
        return jnp.mean(loss)
    if masks is not None:
        loss = loss * masks.reshape(-1).astype(loss.dtype)
    return loss.reshape(bzs, -1)


if __name__ == "__main__":
    key = jax.random.PRNGKey(0)
    k1, k2, k3, k4, k5 = jax.random.split(key, 5)

    # --- Test 1: f32 inputs, rows divisible by tile, no mask, T=1 ---
    batch, seq, vocab = 2, 8, 128           # N = 16 rows, V = 128 lanes
    logits = jax.random.normal(k1, (batch, seq, vocab), dtype=jnp.float32)
    targets = jax.random.normal(k2, (batch, seq, vocab), dtype=jnp.float32)

    loss_fn = ReverseKLDivLoss(eps=EPS, return_scalar=True)
    out = loss_fn(logits, targets, masks=None, T=1.0)
    out = jax.block_until_ready(out)
    ref = _reference(logits, targets)
    assert jnp.allclose(out, ref, rtol=1e-4, atol=1e-6), (out, ref)

    # --- Test 2: bf16 inputs, N not a multiple of the tile, mask, T=2 ---
    b2, s2, v2 = 3, 5, 256                  # N = 15 -> exercises row padding
    lg2 = jax.random.normal(k3, (b2, s2, v2), dtype=jnp.bfloat16)
    tg2 = jax.random.normal(k4, (b2, s2, v2), dtype=jnp.bfloat16)
    masks = jax.random.bernoulli(k5, 0.7, (b2, s2)).at[0, 0].set(True)

    out2 = jax.block_until_ready(loss_fn(lg2, tg2, masks=masks, T=2.0))
    ref2 = _reference(lg2, tg2, masks=masks, T=2.0)
    assert jnp.allclose(out2, ref2, rtol=1e-4, atol=1e-6), (out2, ref2)

    # --- Test 3: return_scalar=False path ---
    loss_fn_rows = ReverseKLDivLoss(eps=EPS, return_scalar=False)
    out3 = jax.block_until_ready(loss_fn_rows(lg2, tg2, masks=masks, T=2.0))
    ref3 = _reference(lg2, tg2, masks=masks, T=2.0, return_scalar=False)
    assert out3.shape == (b2, s2)
    assert jnp.allclose(out3, ref3, rtol=1e-4, atol=1e-6), (out3, ref3)

    # --- Test 4: wider vocab, non-8-multiple rows, no mask (exercises tiling) ---
    b4, s4, v4 = 2, 13, 1024                # N = 26 rows
    lg4 = jax.random.normal(k1, (b4, s4, v4), dtype=jnp.float32)
    tg4 = jax.random.normal(k2, (b4, s4, v4), dtype=jnp.float32)
    out4 = jax.block_until_ready(loss_fn(lg4, tg4, masks=None, T=1.0))
    ref4 = _reference(lg4, tg4)
    assert jnp.allclose(out4, ref4, rtol=1e-4, atol=1e-6), (out4, ref4)

    print("KERNEL_OK")
</pallas_src>

<mosaic_0001>
module attributes {stable_mosaic.version = 11 : i64} {
  func.func @_reverse_kl_kernel(%arg0: i32, %arg1: memref<16x128xf32, #tpu.memory_space<vmem>>, %arg2: memref<16x128xf32, #tpu.memory_space<vmem>>, %arg3: memref<16x1xf32, #tpu.memory_space<vmem>>) attributes {dimension_semantics = [#tpu.dimension_semantics<parallel>], iteration_bounds = array<i64: 1>, scalar_prefetch = 0 : i64, scratch_operands = 0 : i64, tpu.core_type = #tpu.core_type<tc>, window_params = [{transform_indices = @transform_0, window_bounds = array<i64: 16, 128>}, {transform_indices = @transform_1, window_bounds = array<i64: 16, 128>}, {transform_indices = @transform_2, window_bounds = array<i64: 16, 1>}]} {
    %c0 = arith.constant 0 : index
    %c0_0 = arith.constant 0 : index
    %0 = vector.load %arg1[%c0, %c0_0] : memref<16x128xf32, #tpu.memory_space<vmem>>, vector<16x128xf32>
    %cst = arith.constant dense<0xFF800000> : vector<16xf32>
    %1 = vector.multi_reduction <maximumf>, %0, %cst [1] : vector<16x128xf32> to vector<16xf32>
    %2 = vector.shape_cast %1 : vector<16xf32> to vector<16x1xf32>
    %3 = vector.broadcast %2 : vector<16x1xf32> to vector<16x128xf32>
    %4 = arith.subf %0, %3 : vector<16x128xf32>
    %5 = math.exp %4 : vector<16x128xf32>
    %cst_1 = arith.constant dense<0.000000e+00> : vector<16xf32>
    %6 = vector.multi_reduction <add>, %5, %cst_1 [1] : vector<16x128xf32> to vector<16xf32>
    %7 = vector.shape_cast %6 : vector<16xf32> to vector<16x1xf32>
    %8 = tpu.reciprocal %7 : vector<16x1xf32> -> vector<16x1xf32>
    %9 = vector.broadcast %8 : vector<16x1xf32> to vector<16x128xf32>
    %10 = arith.mulf %5, %9 : vector<16x128xf32>
    %cst_2 = arith.constant 7.000000e-05 : f32
    %11 = vector.broadcast %cst_2 : f32 to vector<16x128xf32>
    %12 = arith.addf %10, %11 : vector<16x128xf32>
    %c0_3 = arith.constant 0 : index
    %c0_4 = arith.constant 0 : index
    %13 = vector.load %arg2[%c0_3, %c0_4] : memref<16x128xf32, #tpu.memory_space<vmem>>, vector<16x128xf32>
    %cst_5 = arith.constant dense<0xFF800000> : vector<16xf32>
    %14 = vector.multi_reduction <maximumf>, %13, %cst_5 [1] : vector<16x128xf32> to vector<16xf32>
    %15 = vector.shape_cast %14 : vector<16xf32> to vector<16x1xf32>
    %16 = vector.broadcast %15 : vector<16x1xf32> to vector<16x128xf32>
    %17 = arith.subf %13, %16 : vector<16x128xf32>
    %18 = math.exp %17 : vector<16x128xf32>
    %cst_6 = arith.constant dense<0.000000e+00> : vector<16xf32>
    %19 = vector.multi_reduction <add>, %18, %cst_6 [1] : vector<16x128xf32> to vector<16xf32>
    %20 = vector.shape_cast %19 : vector<16xf32> to vector<16x1xf32>
    %21 = tpu.reciprocal %20 : vector<16x1xf32> -> vector<16x1xf32>
    %22 = vector.broadcast %21 : vector<16x1xf32> to vector<16x128xf32>
    %23 = arith.mulf %18, %22 : vector<16x128xf32>
    %cst_7 = arith.constant 7.000000e-05 : f32
    %24 = vector.broadcast %cst_7 : f32 to vector<16x128xf32>
    %25 = arith.addf %23, %24 : vector<16x128xf32>
    %26 = arith.divf %12, %25 : vector<16x128xf32>
    %27 = math.log %26 : vector<16x128xf32>
    %28 = arith.mulf %12, %27 : vector<16x128xf32>
    %cst_8 = arith.constant dense<0.000000e+00> : vector<16xf32>
    %29 = vector.multi_reduction <add>, %28, %cst_8 [1] : vector<16x128xf32> to vector<16xf32>
    %30 = vector.shape_cast %29 : vector<16xf32> to vector<16x1xf32>
    %cst_9 = arith.constant 0.991119563 : f32
    %31 = vector.broadcast %cst_9 : f32 to vector<16x1xf32>
    %32 = arith.mulf %30, %31 : vector<16x1xf32>
    %c0_10 = arith.constant 0 : index
    %c0_11 = arith.constant 0 : index
    %33 = vector.load %arg3[%c0_10, %c0_11] : memref<16x1xf32, #tpu.memory_space<vmem>>, vector<16x1xf32>
    tpu.vector_store %arg3[%c0_10, %c0_11], %32 {strides = array<i32>} : memref<16x1xf32, #tpu.memory_space<vmem>>, vector<16x1xf32>,
    return
  }
  func.func @transform_0(%arg0: i32) -> (i32, i32) {
    %c0_i32 = arith.constant 0 : i32
    %c0_i32_0 = arith.constant 0 : i32
    return %arg0, %c0_i32 : i32, i32
  }
  func.func @transform_1(%arg0: i32) -> (i32, i32) {
    %c0_i32 = arith.constant 0 : i32
    %c0_i32_0 = arith.constant 0 : i32
    return %arg0, %c0_i32 : i32, i32
  }
  func.func @transform_2(%arg0: i32) -> (i32, i32) {
    %c0_i32 = arith.constant 0 : i32
    %c0_i32_0 = arith.constant 0 : i32
    return %arg0, %c0_i32 : i32, i32
  }
}

</mosaic_0001>

<llo_original>
// kernel: tpu_custom_call.1
$region0: #{tpu_custom_call.1}
  #allocation0 [shape = 'u32[]', space=smem, size = 0x4, offset = 0x4, fixed_abs, tag = 'smem constant byte address 0x4 - core index']
  #allocation1 [shape = 'u32[144,128]{1,0:T(1,128)}', space=vmem, size = 0x12000, scoped, tag = 'internal scratch']
  %s0 = inlined_call_operand.hbm [shape: f32[16,128], index: 0, kind: input, shape index: {}]
  %s1 = inlined_call_operand.hbm [shape: f32[16,128], index: 1, kind: input, shape index: {}]
  %s2 = inlined_call_operand.vmem [shape: f32[16,1], index: 2, kind: output, shape index: {}]
  %s3 = sld [smem:[#allocation0]]
  $region26: #{tpu_custom_call.1} parent=0
    _
  %s5 = ssub.s32 1, %s3
  %s6 = scalar_select 0, %s5, %s3
  $region1: #{tpu_custom_call.1} parent=0
    #allocation2 [shape = 'u8[8192]{0}', space=vmem, size = 0x2000, scoped, tag = 'input window, operand 0, single buffered']
    #allocation3 [shape = 's32[1]{0}', space=sflag, size = 0x4, scoped, tag = 'scoped memory for tpu_custom_call.1']
    #allocation4 [shape = 'u8[8192]{0}', space=vmem, size = 0x2000, scoped, tag = 'input window, operand 1, single buffered']
    #allocation5 [shape = 's32[1]{0}', space=sflag, size = 0x4, scoped, tag = 'scoped memory for tpu_custom_call.1']
    %7 = vsyncpa [#allocation3], 0
    %8 = vsyncpa [#allocation5], 0
    // Predicated region
    $region2: #{tpu_custom_call.1} parent=1 // pred_check
      _
    $region3: #{tpu_custom_call.1} parent=1 // pred_check_branch
      %10 = sbr.rel (0) target = $region5
    $region4: #{tpu_custom_call.1} parent=1 // pred_region
      %s12 = ssub.s32 256, 256
      %13 = vsyncadd [#allocation3], %s12
      %s14 = sshll.u32 [#allocation2], 4
      %s15 = int_to_ptr.vmem [resolvable:$true] %s14
      %20 = dma.hbm_to_vmem [thread:$0]  %s0, 256, %s15, [#allocation3], 128, 128, 8
    $region5: #{tpu_custom_call.1} parent=1 // pred_fallthru
      _
    // Predicated region
    $region6: #{tpu_custom_call.1} parent=1 // pred_check
      _
    $region7: #{tpu_custom_call.1} parent=1 // pred_check_branch
      %22 = sbr.rel (0) target = $region9
    $region8: #{tpu_custom_call.1} parent=1 // pred_region
      %s24 = ssub.s32 256, 256
      %25 = vsyncadd [#allocation5], %s24
      %s26 = sshll.u32 [#allocation4], 4
      %s27 = int_to_ptr.vmem [resolvable:$true] %s26
      %32 = dma.hbm_to_vmem [thread:$0]  %s1, 256, %s27, [#allocation5], 128, 128, 8
    $region9: #{tpu_custom_call.1} parent=1 // pred_fallthru
      _
    // Predicated region
    $region10: #{tpu_custom_call.1} parent=1 // pred_check
      _
    $region11: #{tpu_custom_call.1} parent=1 // pred_check_branch
      %34 = sbr.rel (0) target = $region13
    $region12: #{tpu_custom_call.1} parent=1 // pred_region
      %35 = dma.done [#allocation3], 256
    $region13: #{tpu_custom_call.1} parent=1 // pred_fallthru
      _
    // Predicated region
    $region14: #{tpu_custom_call.1} parent=1 // pred_check
      _
    $region15: #{tpu_custom_call.1} parent=1 // pred_check_branch
      %37 = sbr.rel (0) target = $region17
    $region16: #{tpu_custom_call.1} parent=1 // pred_region
      %38 = dma.done [#allocation5], 256
    $region17: #{tpu_custom_call.1} parent=1 // pred_fallthru
      _
    %v39 = vld [vmem:[#allocation2] sm:$0xff]
    %v40 = vld [vmem:[#allocation2 + $0x8] sm:$0xff]
    %41 = vmax.xlane.f32.xlu0 %v39
    %v42 = vpop.xlane.xlu0 %41
    %43 = vmax.xlane.f32.xlu0 %v40
    %v44 = vpop.xlane.xlu0 %43
    %v45 = vsub.f32 %v39, %v42
    %v46 = vsub.f32 %v40, %v44
    %v47 = vmul.f32 %v45, 1.442695
    %v48 = vpow.pop %v47
    %v49 = vmul.f32 %v46, 1.442695
    %v50 = vpow.pop %v49
    %51 = vadd.xlane.f32.xlu0 %v48
    %v52 = vpop.xlane.xlu0 %51
    %53 = vadd.xlane.f32.xlu0 %v50
    %v54 = vpop.xlane.xlu0 %53
    %v55 = vrcp.pop %v52
    %v56 = vrcp.pop %v54
    %v57 = vmul.f32 %v48, %v55
    %v58 = vmul.f32 %v50, %v56
    %v59 = vadd.f32 %v57, 7e-05
    %v60 = vadd.f32 %v58, 7e-05
    %v61 = vld [vmem:[#allocation4] sm:$0xff]
    %v62 = vld [vmem:[#allocation4 + $0x8] sm:$0xff]
    %63 = vmax.xlane.f32.xlu0 %v61
    %v64 = vpop.xlane.xlu0 %63
    %65 = vmax.xlane.f32.xlu0 %v62
    %v66 = vpop.xlane.xlu0 %65
    %v67 = vsub.f32 %v61, %v64
    %v68 = vsub.f32 %v62, %v66
    %v69 = vmul.f32 %v67, 1.442695
    %v70 = vpow.pop %v69
    %v71 = vmul.f32 %v68, 1.442695
    %v72 = vpow.pop %v71
    %73 = vadd.xlane.f32.xlu0 %v70
    %v74 = vpop.xlane.xlu0 %73
    %75 = vadd.xlane.f32.xlu0 %v72
    %v76 = vpop.xlane.xlu0 %75
    %v77 = vrcp.pop %v74
    %v78 = vrcp.pop %v76
    %v79 = vmul.f32 %v70, %v77
    %v80 = vmul.f32 %v72, %v78
    %v81 = vadd.f32 %v79, 7e-05
    %v82 = vadd.f32 %v80, 7e-05
    %v83 = vrcp.pop %v81
    %v84 = vmul.f32 %v59, %v83
    %v85 = vrcp.pop %v82
    %v86 = vmul.f32 %v60, %v85
    %v87 = vlog2.pop %v84
    %v88 = vmul.f32 %v87, 0.6931472
    %v89 = vlog2.pop %v86
    %v90 = vmul.f32 %v89, 0.6931472
    %v91 = vmul.f32 %v59, %v88
    %v92 = vmul.f32 %v60, %v90
    %93 = vadd.xlane.f32.xlu0 %v91
    %v94 = vpop.xlane.xlu0 %93
    %95 = vadd.xlane.f32.xlu0 %v92
    %v96 = vpop.xlane.xlu0 %95
    %v97 = vmul.f32 %v94, 0.99111956
    %v98 = vmul.f32 %v96, 0.99111956
    %vm99 = vcmask 7168
    %100 = vst.msk [vmem:[%s2] sm:$0xff] %vm99, %v97
    %101 = vst.msk [vmem:[%s2 + $0x8] sm:$0xff] %vm99, %v98
    // Predicated region
    $region18: #{tpu_custom_call.1} parent=1 // pred_check
      _
    $region19: #{tpu_custom_call.1} parent=1 // pred_check_branch
      %103 = sbr.rel (0) target = $region21
    $region20: #{tpu_custom_call.1} parent=1 // pred_region
      _
    $region21: #{tpu_custom_call.1} parent=1 // pred_fallthru
      _
    // Predicated region
    $region22: #{tpu_custom_call.1} parent=1 // pred_check
      _
    $region23: #{tpu_custom_call.1} parent=1 // pred_check_branch
      %105 = sbr.rel (0) target = $region25
    $region24: #{tpu_custom_call.1} parent=1 // pred_region
      _
    $region25: #{tpu_custom_call.1} parent=1 // pred_fallthru
      _
    %106 = vsyncpa [#allocation3], 1
    %107 = vsyncpa [#allocation5], 1

</llo_original>
